<compile_context>
chip_gen: v7x
topology: tpu7x:2x2x1
jax: 0.10.0
libtpu: 0.0.40
codegen_flags: <defaults>
</compile_context>

<pallas_src>
import functools

import jax
import jax.numpy as jnp
from jax.experimental import pallas as pl
from jax.experimental.pallas import tpu as pltpu


_VMEM_LIMIT_BYTES = 32 * 1024 * 1024   # > v5e default (16), = v6e default, < v7x physical (64)
_BLOCK_BYTES = 4 * 1024 * 1024         # ~4 MiB streamed tiles (double-buffered by Pallas)
_FUSE_BUDGET_BYTES = 24 * 1024 * 1024  # fused path: in + out + f32 temps must fit under this


def _round_up(v, m):
    return ((v + m - 1) // m) * m


def _sublane_unit(dtype):
    # Native sublane tile height: 8 rows for 4-byte, 16 for 2-byte, 32 for 1-byte dtypes.
    return max(8, 32 // jnp.dtype(dtype).itemsize)


def _choose_block(dim, unit, max_size):
    """Largest multiple of `unit` that evenly divides `dim` and is <= max_size.

    Returns the full extent `dim` (always a legal block) when `dim` already
    fits the budget or cannot be tiled without padding; callers pad the array
    first in the latter case so this fallback never produces oversized blocks.
    """
    if dim <= max_size:
        return dim
    if dim % unit != 0:
        return dim
    best = unit
    for mult in range(1, dim // unit + 1):
        cand = mult * unit
        if cand > max_size:
            break
        if dim % cand == 0:
            best = cand
    return best


# ----------------------------- kernels ------------------------------------- #

def _fused_kernel(x_ref, gamma_ref, beta_ref, alpha_ref, o_ref, *, count, eps):
    """Single pass: batch stats + fold + BN + PReLU with x resident in VMEM.

    x_ref: (N, C, H*W); gamma/beta/alpha refs: (1, C, 1).
    """
    x = x_ref[...].astype(jnp.float32)                     # (n, c, hw)
    s = jnp.sum(x, axis=2, keepdims=True)                  # (n, c, 1)
    ss = jnp.sum(x * x, axis=2, keepdims=True)             # (n, c, 1)
    ch_sum = jnp.sum(s, axis=0, keepdims=True)             # (1, c, 1)
    ch_sumsq = jnp.sum(ss, axis=0, keepdims=True)          # (1, c, 1)

    inv_count = 1.0 / count
    mean = ch_sum * inv_count
    var = ch_sumsq * inv_count - mean * mean               # biased (BN training)
    inv_std = jax.lax.rsqrt(var + eps)

    scale = gamma_ref[...] * inv_std                       # (1, c, 1)
    bias = beta_ref[...] - mean * scale
    y = x * scale + bias
    o_ref[...] = jnp.where(y > 0.0, y, alpha_ref[...] * y).astype(o_ref.dtype)


def _row_stats_kernel(x_ref, sum_ref, sumsq_ref):
    """Per-row (one row == one (n, c) spatial plane) sum and sum of squares.

    Grid = (row_tiles, hw_tiles); hw is the trailing reduction axis, so the
    (tile_r, 1) outputs act as VMEM-resident accumulators across hw tiles.
    """
    @pl.when(pl.program_id(1) == 0)
    def _():
        sum_ref[...] = jnp.zeros_like(sum_ref)
        sumsq_ref[...] = jnp.zeros_like(sumsq_ref)

    x = x_ref[...].astype(jnp.float32)
    sum_ref[...] += jnp.sum(x, axis=1, keepdims=True)
    sumsq_ref[...] += jnp.sum(x * x, axis=1, keepdims=True)


def _apply_kernel(params_ref, x_ref, o_ref):
    """y = x * scale + bias (pre-folded BN), then per-channel PReLU.

    params_ref: single stacked (3, tile_r, 1) block = [scale, bias, alpha].
    """
    scale = params_ref[0]
    bias = params_ref[1]
    alpha = params_ref[2]
    x = x_ref[...].astype(jnp.float32)
    y = x * scale + bias
    o_ref[...] = jnp.where(y > 0.0, y, alpha * y).astype(o_ref.dtype)


# ----------------------------- wrappers ------------------------------------ #

def _bn_prelu_fused(x_nchw, gamma, beta, alpha, *, eps):
    n, c, h, w = x_nchw.shape
    hw = h * w
    count = n * h * w

    x3d = x_nchw.reshape(n, c, hw)                         # free view of NCHW
    g = gamma.astype(jnp.float32).reshape(1, c, 1)
    b = beta.astype(jnp.float32).reshape(1, c, 1)
    a = alpha.astype(jnp.float32).reshape(1, c, 1)

    out = pl.pallas_call(
        functools.partial(_fused_kernel, count=float(count), eps=float(eps)),
        out_shape=jax.ShapeDtypeStruct((n, c, hw), x_nchw.dtype),
        compiler_params=pltpu.CompilerParams(
            vmem_limit_bytes=_VMEM_LIMIT_BYTES),
    )(x3d, g, b, a)
    return out.reshape(n, c, h, w)


def _bn_prelu_two_pass(x_nchw, gamma, beta, alpha, *, eps, block_bytes):
    n, c, h, w = x_nchw.shape
    r = n * c
    hw = h * w
    count = n * h * w

    unit_r = _sublane_unit(x_nchw.dtype)
    elem_bytes = jnp.dtype(x_nchw.dtype).itemsize

    # NCHW is contiguous as (N*C, H*W): free view, H*W on the 128-lane axis.
    x2d = x_nchw.reshape(r, hw)

    # ---- lane (hw) axis: pad to a 128 multiple rather than falling back to
    # a giant full-extent block when hw is large and not 128-aligned. -------
    max_hw = max(128, block_bytes // (unit_r * elem_bytes))
    hw_p = hw
    if hw > max_hw and hw % 128 != 0:
        hw_p = _round_up(hw, 128)
    tile_hw = _choose_block(hw_p, 128, max_hw)

    # ---- sublane (row) axis, dtype-aware unit -----------------------------
    max_r = max(unit_r, block_bytes // (tile_hw * elem_bytes))
    r_p = r
    if r > max_r and r % unit_r != 0:
        r_p = _round_up(r, unit_r)
    # v7x megacore: keep >= 2 blocks on the leading "parallel" axis when the
    # row extent allows it, so both TensorCores get work on the stats pass.
    if r_p % unit_r == 0 and r_p // 2 >= unit_r:
        max_r = min(max_r, r_p // 2)
    tile_r = _choose_block(r_p, unit_r, max_r)

    if (r_p, hw_p) != (r, hw):
        # Zero padding is stats-neutral (adds 0 to sum/sumsq; we divide by the
        # true count); padded output region is sliced off below.
        x2d = jnp.pad(x2d, ((0, r_p - r), (0, hw_p - hw)))

    grid = (r_p // tile_r, hw_p // tile_hw)

    # ---- pass 1: per-row sum / sumsq -------------------------------------- #
    row_sum, row_sumsq = pl.pallas_call(
        _row_stats_kernel,
        out_shape=(
            jax.ShapeDtypeStruct((r_p, 1), jnp.float32),
            jax.ShapeDtypeStruct((r_p, 1), jnp.float32),
        ),
        grid_spec=pltpu.PrefetchScalarGridSpec(
            num_scalar_prefetch=0,
            grid=grid,
            in_specs=[pl.BlockSpec((tile_r, tile_hw), lambda i, j: (i, j))],
            out_specs=(
                pl.BlockSpec((tile_r, 1), lambda i, j: (i, 0)),
                pl.BlockSpec((tile_r, 1), lambda i, j: (i, 0)),
            ),
        ),
        compiler_params=pltpu.CompilerParams(
            dimension_semantics=("parallel", "arbitrary"),
            vmem_limit_bytes=_VMEM_LIMIT_BYTES),
    )(x2d)

    # ---- tiny XLA fold (only O(N*C) scalars; the fused path above removes
    # this entirely for VMEM-resident sizes) -------------------------------- #
    ch_sum = jnp.sum(row_sum[:r, 0].reshape(n, c), axis=0)      # (C,)
    ch_sumsq = jnp.sum(row_sumsq[:r, 0].reshape(n, c), axis=0)  # (C,)
    mean = ch_sum / count
    var = ch_sumsq / count - mean * mean                        # biased (BN training)
    inv_std = jax.lax.rsqrt(var + jnp.float32(eps))
    scale = gamma.astype(jnp.float32) * inv_std
    bias = beta.astype(jnp.float32) - mean * scale

    # One stacked (3, r_p, 1) parameter stream: [scale, bias, alpha] per row.
    params = jnp.stack([jnp.tile(scale, n),
                        jnp.tile(bias, n),
                        jnp.tile(alpha.astype(jnp.float32), n)], axis=0)
    if r_p != r:
        params = jnp.pad(params, ((0, 0), (0, r_p - r)))
    params = params.reshape(3, r_p, 1)

    # ---- pass 2: normalize (pre-folded) + PReLU ---------------------------- #
    out2d = pl.pallas_call(
        _apply_kernel,
        out_shape=jax.ShapeDtypeStruct((r_p, hw_p), x_nchw.dtype),
        grid_spec=pltpu.PrefetchScalarGridSpec(
            num_scalar_prefetch=0,
            grid=grid,
            in_specs=[
                pl.BlockSpec((3, tile_r, 1), lambda i, j: (0, i, 0)),   # params
                pl.BlockSpec((tile_r, tile_hw), lambda i, j: (i, j)),   # x
            ],
            out_specs=pl.BlockSpec((tile_r, tile_hw), lambda i, j: (i, j)),
        ),
        compiler_params=pltpu.CompilerParams(
            dimension_semantics=("parallel", "parallel"),
            vmem_limit_bytes=_VMEM_LIMIT_BYTES),
    )(params, x2d)

    if (r_p, hw_p) != (r, hw):
        out2d = out2d[:r, :hw]
    return out2d.reshape(n, c, h, w)


def bn_prelu(x_nchw, gamma, beta, alpha, *, eps=1e-3,
             block_bytes=_BLOCK_BYTES, fuse_budget_bytes=_FUSE_BUDGET_BYTES):
    """Forward pass of BNPReLU on an NCHW input (training-mode BatchNorm)."""
    n, c, h, w = x_nchw.shape
    item = jnp.dtype(x_nchw.dtype).itemsize
    # Fused-path VMEM estimate: input + output in native dtype + ~2 f32-sized
    # temporaries for the normalized value.
    fused_bytes = n * c * h * w * (2 * item + 2 * 4)
    if fused_bytes <= fuse_budget_bytes:
        return _bn_prelu_fused(x_nchw, gamma, beta, alpha, eps=eps)
    return _bn_prelu_two_pass(x_nchw, gamma, beta, alpha, eps=eps,
                              block_bytes=block_bytes)


def bn_prelu_reference(x_nchw, gamma, beta, alpha, *, eps=1e-3):
    x = x_nchw.astype(jnp.float32)
    mean = jnp.mean(x, axis=(0, 2, 3), keepdims=True)
    var = jnp.mean((x - mean) ** 2, axis=(0, 2, 3), keepdims=True)  # biased
    y = (x - mean) * jax.lax.rsqrt(var + eps)
    y = y * gamma.reshape(1, -1, 1, 1) + beta.reshape(1, -1, 1, 1)
    a = alpha.reshape(1, -1, 1, 1)
    return jnp.where(y > 0, y, a * y).astype(x_nchw.dtype)


if __name__ == "__main__":
    key = jax.random.PRNGKey(0)
    kx, kg, kb = jax.random.split(key, 3)

    N, C, H, W = 2, 4, 16, 16
    x = jax.random.normal(kx, (N, C, H, W), dtype=jnp.float32)

    # PyTorch defaults: gamma=1, beta=0, PReLU alpha=0.25; perturb gamma/beta
    # slightly so the affine path is exercised.
    gamma = jnp.ones((C,), jnp.float32) + 0.1 * jax.random.normal(kg, (C,))
    beta = 0.1 * jax.random.normal(kb, (C,))
    alpha = jnp.full((C,), 0.25, jnp.float32)

    ref = bn_prelu_reference(x, gamma, beta, alpha)

    # Fused single-pass path (used whenever x fits in VMEM — includes this size).
    out_fused = jax.block_until_ready(bn_prelu(x, gamma, beta, alpha))
    assert out_fused.shape == (N, C, H, W)
    assert jnp.allclose(out_fused, ref, atol=1e-4, rtol=1e-4), "fused mismatch"

    # Tiled two-pass path (large-x fallback) — force it to validate on hardware.
    out_tiled = jax.block_until_ready(
        bn_prelu(x, gamma, beta, alpha, fuse_budget_bytes=0))
    assert out_tiled.shape == (N, C, H, W)
    assert jnp.allclose(out_tiled, ref, atol=1e-4, rtol=1e-4), "two-pass mismatch"

    print("KERNEL_OK")
</pallas_src>

<mosaic_0001>
module attributes {stable_mosaic.version = 11 : i64} {
  func.func @_fused_kernel(%arg0: memref<2x4x256xf32, #tpu.memory_space<vmem>>, %arg1: memref<1x4x1xf32, #tpu.memory_space<vmem>>, %arg2: memref<1x4x1xf32, #tpu.memory_space<vmem>>, %arg3: memref<1x4x1xf32, #tpu.memory_space<vmem>>, %arg4: memref<2x4x256xf32, #tpu.memory_space<vmem>>) attributes {dimension_semantics = [], scalar_prefetch = 0 : i64, scratch_operands = 0 : i64, tpu.core_type = #tpu.core_type<tc>} {
    %c0 = arith.constant 0 : index
    %c0_0 = arith.constant 0 : index
    %c0_1 = arith.constant 0 : index
    %0 = vector.load %arg0[%c0, %c0_0, %c0_1] : memref<2x4x256xf32, #tpu.memory_space<vmem>>, vector<2x4x256xf32>
    %cst = arith.constant dense<0.000000e+00> : vector<2x4xf32>
    %1 = vector.multi_reduction <add>, %0, %cst [2] : vector<2x4x256xf32> to vector<2x4xf32>
    %2 = vector.shape_cast %1 : vector<2x4xf32> to vector<2x4x1xf32>
    %3 = arith.mulf %0, %0 : vector<2x4x256xf32>
    %cst_2 = arith.constant dense<0.000000e+00> : vector<2x4xf32>
    %4 = vector.multi_reduction <add>, %3, %cst_2 [2] : vector<2x4x256xf32> to vector<2x4xf32>
    %5 = vector.shape_cast %4 : vector<2x4xf32> to vector<2x4x1xf32>
    %cst_3 = arith.constant dense<0.000000e+00> : vector<4x1xf32>
    %6 = vector.multi_reduction <add>, %2, %cst_3 [0] : vector<2x4x1xf32> to vector<4x1xf32>
    %7 = vector.shape_cast %6 : vector<4x1xf32> to vector<1x4x1xf32>
    %cst_4 = arith.constant dense<0.000000e+00> : vector<4x1xf32>
    %8 = vector.multi_reduction <add>, %5, %cst_4 [0] : vector<2x4x1xf32> to vector<4x1xf32>
    %9 = vector.shape_cast %8 : vector<4x1xf32> to vector<1x4x1xf32>
    %cst_5 = arith.constant 0.001953125 : f32
    %10 = vector.broadcast %cst_5 : f32 to vector<1x4x1xf32>
    %11 = arith.mulf %7, %10 : vector<1x4x1xf32>
    %cst_6 = arith.constant 0.001953125 : f32
    %12 = vector.broadcast %cst_6 : f32 to vector<1x4x1xf32>
    %13 = arith.mulf %9, %12 : vector<1x4x1xf32>
    %14 = arith.mulf %11, %11 : vector<1x4x1xf32>
    %15 = arith.subf %13, %14 : vector<1x4x1xf32>
    %cst_7 = arith.constant 1.000000e-03 : f32
    %16 = vector.broadcast %cst_7 : f32 to vector<1x4x1xf32>
    %17 = arith.addf %15, %16 : vector<1x4x1xf32>
    %18 = math.rsqrt %17 : vector<1x4x1xf32>
    %c0_8 = arith.constant 0 : index
    %c0_9 = arith.constant 0 : index
    %c0_10 = arith.constant 0 : index
    %19 = vector.load %arg1[%c0_8, %c0_9, %c0_10] : memref<1x4x1xf32, #tpu.memory_space<vmem>>, vector<1x4x1xf32>
    %20 = arith.mulf %19, %18 : vector<1x4x1xf32>
    %c0_11 = arith.constant 0 : index
    %c0_12 = arith.constant 0 : index
    %c0_13 = arith.constant 0 : index
    %21 = vector.load %arg2[%c0_11, %c0_12, %c0_13] : memref<1x4x1xf32, #tpu.memory_space<vmem>>, vector<1x4x1xf32>
    %22 = arith.mulf %11, %20 : vector<1x4x1xf32>
    %23 = arith.subf %21, %22 : vector<1x4x1xf32>
    %24 = vector.broadcast %20 : vector<1x4x1xf32> to vector<2x4x256xf32>
    %25 = arith.mulf %0, %24 : vector<2x4x256xf32>
    %26 = vector.broadcast %23 : vector<1x4x1xf32> to vector<2x4x256xf32>
    %27 = arith.addf %25, %26 : vector<2x4x256xf32>
    %cst_14 = arith.constant 0.000000e+00 : f32
    %28 = vector.broadcast %cst_14 : f32 to vector<2x4x256xf32>
    %29 = arith.cmpf ogt, %27, %28 : vector<2x4x256xf32>
    %c0_15 = arith.constant 0 : index
    %c0_16 = arith.constant 0 : index
    %c0_17 = arith.constant 0 : index
    %30 = vector.load %arg3[%c0_15, %c0_16, %c0_17] : memref<1x4x1xf32, #tpu.memory_space<vmem>>, vector<1x4x1xf32>
    %31 = vector.broadcast %30 : vector<1x4x1xf32> to vector<2x4x256xf32>
    %32 = arith.mulf %31, %27 : vector<2x4x256xf32>
    %33 = arith.select %29, %27, %32 : vector<2x4x256xi1>, vector<2x4x256xf32>
    %c0_18 = arith.constant 0 : index
    %c0_19 = arith.constant 0 : index
    %c0_20 = arith.constant 0 : index
    %34 = vector.load %arg4[%c0_18, %c0_19, %c0_20] : memref<2x4x256xf32, #tpu.memory_space<vmem>>, vector<2x4x256xf32>
    tpu.vector_store %arg4[%c0_18, %c0_19, %c0_20], %33 {strides = array<i32>} : memref<2x4x256xf32, #tpu.memory_space<vmem>>, vector<2x4x256xf32>,
    return
  }
}

</mosaic_0001>

<llo_original>
// kernel: tpu_custom_call.1
$region0: #{tpu_custom_call.1}
  #allocation0 [shape = 'u32[]', space=smem, size = 0x4, offset = 0x4, fixed_abs, tag = 'smem constant byte address 0x4 - core index']
  #allocation1 [shape = 'u32[144,128]{1,0:T(1,128)}', space=vmem, size = 0x12000, scoped, tag = 'internal scratch']
  %s0 = inlined_call_operand.hbm [shape: f32[2,4,256], index: 0, kind: input, shape index: {}]
  %s1 = inlined_call_operand.vmem [shape: f32[1,4,1], index: 1, kind: input, shape index: {}]
  %s2 = inlined_call_operand.vmem [shape: f32[1,4,1], index: 2, kind: input, shape index: {}]
  %s3 = inlined_call_operand.vmem [shape: f32[1,4,1], index: 3, kind: input, shape index: {}]
  %s4 = inlined_call_operand.hbm [shape: f32[2,4,256], index: 4, kind: output, shape index: {}]
  %s5 = sld [smem:[#allocation0]]
  $region30: #{tpu_custom_call.1} parent=0
    _
  %s7 = ssub.s32 1, %s5
  %s8 = scalar_select 0, %s7, %s5
  $region1: #{tpu_custom_call.1} parent=0
    #allocation2 [shape = 'u8[8192]{0}', space=vmem, size = 0x2000, scoped, tag = 'input window, operand 0, single buffered']
    #allocation3 [shape = 's32[1]{0}', space=sflag, size = 0x4, scoped, tag = 'scoped memory for tpu_custom_call.1']
    #allocation4 [shape = 's32[1]{0}', space=sflag, size = 0x4, scoped, tag = 'scoped memory for tpu_custom_call.1']
    #allocation5 [shape = 'u8[8192]{0}', space=vmem, size = 0x2000, scoped, tag = 'output window, operand 0, single buffered']
    %9 = vsyncpa [#allocation3], 0
    %10 = vsyncpa [#allocation4], 0
    // Predicated region
    $region2: #{tpu_custom_call.1} parent=1 // pred_check
      _
    $region3: #{tpu_custom_call.1} parent=1 // pred_check_branch
      %12 = sbr.rel (0) target = $region5
    $region4: #{tpu_custom_call.1} parent=1 // pred_region
      %s14 = ssub.s32 256, 256
      %15 = vsyncadd [#allocation3], %s14
      %s16 = sshll.u32 [#allocation2], 4
      %s17 = int_to_ptr.vmem [resolvable:$true] %s16
      %22 = dma.hbm_to_vmem [thread:$0]  %s0, 256, %s17, [#allocation3], 128, 128, 8
    $region5: #{tpu_custom_call.1} parent=1 // pred_fallthru
      _
    // Predicated region
    $region6: #{tpu_custom_call.1} parent=1 // pred_check
      _
    $region7: #{tpu_custom_call.1} parent=1 // pred_check_branch
      %24 = sbr.rel (0) target = $region9
    $region8: #{tpu_custom_call.1} parent=1 // pred_region
      _
    $region9: #{tpu_custom_call.1} parent=1 // pred_fallthru
      _
    // Predicated region
    $region10: #{tpu_custom_call.1} parent=1 // pred_check
      _
    $region11: #{tpu_custom_call.1} parent=1 // pred_check_branch
      %26 = sbr.rel (0) target = $region13
    $region12: #{tpu_custom_call.1} parent=1 // pred_region
      _
    $region13: #{tpu_custom_call.1} parent=1 // pred_fallthru
      _
    // Predicated region
    $region14: #{tpu_custom_call.1} parent=1 // pred_check
      _
    $region15: #{tpu_custom_call.1} parent=1 // pred_check_branch
      %28 = sbr.rel (0) target = $region17
    $region16: #{tpu_custom_call.1} parent=1 // pred_region
      _
    $region17: #{tpu_custom_call.1} parent=1 // pred_fallthru
      _
    // Predicated region
    $region18: #{tpu_custom_call.1} parent=1 // pred_check
      _
    $region19: #{tpu_custom_call.1} parent=1 // pred_check_branch
      %30 = sbr.rel (0) target = $region21
    $region20: #{tpu_custom_call.1} parent=1 // pred_region
      %31 = dma.done [#allocation3], 256
    $region21: #{tpu_custom_call.1} parent=1 // pred_fallthru
      _
    %v32 = vld [vmem:[#allocation2] sm:$0xff]
    %v33 = vld [vmem:[#allocation2 + $0x8] sm:$0xff]
    %v36 = vcombine.high %v32, %v32
    %v37 = vcombine.high %v33, %v33
    %vm40 = vcmask 1043456
    %v41 = vsel %vm40, %v32, 0.0
    %v42 = vsel %vm40, %v36, 0.0
    %v43 = vadd.f32 %v41, %v42
    %44 = vadd.xlane.f32.xlu0 %v43
    %v45 = vpop.xlane.xlu0 %44
    %v46 = vsel %vm40, %v33, 0.0
    %v47 = vsel %vm40, %v37, 0.0
    %v48 = vadd.f32 %v46, %v47
    %49 = vadd.xlane.f32.xlu0 %v48
    %v50 = vpop.xlane.xlu0 %49
    %v51 = vmul.f32 %v32, %v32
    %v52 = vmul.f32 %v33, %v33
    %v55 = vcombine.high %v51, %v51
    %v56 = vcombine.high %v52, %v52
    %v59 = vsel %vm40, %v51, 0.0
    %v60 = vsel %vm40, %v55, 0.0
    %v61 = vadd.f32 %v59, %v60
    %62 = vadd.xlane.f32.xlu0 %v61
    %v63 = vpop.xlane.xlu0 %62
    %v64 = vsel %vm40, %v52, 0.0
    %v65 = vsel %vm40, %v56, 0.0
    %v66 = vadd.f32 %v64, %v65
    %67 = vadd.xlane.f32.xlu0 %v66
    %v68 = vpop.xlane.xlu0 %67
    %v69 = vsel %vm40, %v45, 0.0
    %v70 = vsel %vm40, %v50, 0.0
    %v71 = vadd.f32 %v69, %v70
    %v72 = vsel %vm40, %v63, 0.0
    %v73 = vsel %vm40, %v68, 0.0
    %v74 = vadd.f32 %v72, %v73
    %v75 = vmul.f32 %v71, 0.001953125
    %v76 = vmul.f32 %v74, 0.001953125
    %v77 = vmul.f32 %v75, %v75
    %v78 = vsub.f32 %v76, %v77
    %v79 = vadd.f32 %v78, 0.001
    %v80 = vrsqrt.pop %v79
    %v81 = vld [vmem:[%s1] sm:$0xf]
    %v82 = vmul.f32 %v81, %v80
    %v83 = vld [vmem:[%s2] sm:$0xf]
    %v84 = vmul.f32 %v75, %v82
    %v85 = vsub.f32 %v83, %v84
    %87 = vset.pattern.permute.xlu0 0
    %88 = vperm.xlu0 %87, %v82
    %v89 = vpop.permute.xlu0 %88
    %v91 = vunpack.c.l.s4 839922192
    %v92 = vunpack.c.0.s8 %v91
    %v93 = vlaneseq
    %v94 = vshrl.u32 %v93, 7
    %v95 = vsub.s32 %v92, %v94
    %v96 = vrot.slane %v89, %v95
    %v98 = vmul.f32 %v32, %v96
    %v99 = vmul.f32 %v33, %v96
    %101 = vset.pattern.permute.xlu0 0
    %102 = vperm.xlu0 %101, %v85
    %v103 = vpop.permute.xlu0 %102
    %v105 = vunpack.c.l.s4 839922192
    %v106 = vunpack.c.0.s8 %v105
    %v107 = vlaneseq
    %v108 = vshrl.u32 %v107, 7
    %v109 = vsub.s32 %v106, %v108
    %v110 = vrot.slane %v103, %v109
    %v112 = vadd.f32 %v98, %v110
    %v113 = vadd.f32 %v99, %v110
    %vm114 = vcmp.gt.f32.partialorder %v112, 0.0
    %vm115 = vcmp.gt.f32.partialorder %v113, 0.0
    %v116 = vld [vmem:[%s3] sm:$0xf]
    %118 = vset.pattern.permute.xlu0 0
    %119 = vperm.xlu0 %118, %v116
    %v120 = vpop.permute.xlu0 %119
    %v124 = vcombine.high %v112, %v112
    %v125 = vcombine.high %v113, %v113
    %v128 = vmul.f32 %v120, %v112
    %v129 = vmul.f32 %v120, %v124
    %v130 = vmul.f32 %v120, %v113
    %v131 = vmul.f32 %v120, %v125
    %v136 = vcombine.low %v128, %v129
    %v137 = vcombine.low %v130, %v131
    %v140 = vsel %vm114, %v112, %v136
    %v141 = vsel %vm115, %v113, %v137
    %142 = vst [vmem:[#allocation5] sm:$0xff] %v140
    %143 = vst [vmem:[#allocation5 + $0x8] sm:$0xff] %v141
    // Predicated region
    $region22: #{tpu_custom_call.1} parent=1 // pred_check
      _
    $region23: #{tpu_custom_call.1} parent=1 // pred_check_branch
      %145 = sbr.rel (0) target = $region25
    $region24: #{tpu_custom_call.1} parent=1 // pred_region
      %s147 = ssub.s32 256, 256
      %148 = vsyncadd [#allocation4], %s147
      %s149 = sshll.u32 [#allocation5], 4
      %s150 = int_to_ptr.vmem [resolvable:$true] %s149
      %155 = dma.vmem_to_hbm [thread:$0]  %s150, 256, %s4, [#allocation4], 128, 128, 8
    $region25: #{tpu_custom_call.1} parent=1 // pred_fallthru
      _
    // Predicated region
    $region26: #{tpu_custom_call.1} parent=1 // pred_check
      _
    $region27: #{tpu_custom_call.1} parent=1 // pred_check_branch
      %157 = sbr.rel (0) target = $region29
    $region28: #{tpu_custom_call.1} parent=1 // pred_region
      %158 = dma.done [#allocation4], 256
    $region29: #{tpu_custom_call.1} parent=1 // pred_fallthru
      _
    %159 = vsyncpa [#allocation3], 1
    %160 = vsyncpa [#allocation4], 1

</llo_original>
